<compile_context>
chip_gen: v7x
topology: tpu7x:2x2x1
jax: 0.10.0
libtpu: 0.0.40
codegen_flags: <defaults>
</compile_context>

<pallas_src>
import jax
import jax.numpy as jnp
from jax.experimental import pallas as pl
from jax.experimental.pallas import tpu as pltpu


_MAX_TILE_N = 4096            # sublane-dim cap; bigger tiles buy nothing measurable
_INPUT_PIPELINE_BUFFERS = 3   # DMA-bound kernel: a 3rd input buffer hides DMA gaps


def _chip_config():
    """Best-effort per-generation tuning; falls back to conservative values."""
    kind = ""
    try:
        kind = jax.devices()[0].device_kind.lower()
    except Exception:  # pragma: no cover - no devices / unusual backend
        pass
    if "v7" in kind or "7x" in kind:
        # v7x: 64 MiB physical VMEM, 2 TensorCores -> force >= 2 N blocks.
        return dict(input_budget=24 << 20, vmem_limit=48 << 20,
                    max_tile_d=4096, n_splits=2)
    if any(s in kind for s in ("v6", "v5", "v4")):
        # 128 MiB physical VMEM parts: larger contiguous blocks amortize the
        # ~0.35us per-grid-step overhead and cut DMA descriptor count.
        return dict(input_budget=40 << 20, vmem_limit=64 << 20,
                    max_tile_d=8192, n_splits=1)
    # Unknown part: the conservative numbers that already ran clean.
    return dict(input_budget=12 << 20, vmem_limit=32 << 20,
                max_tile_d=2048, n_splits=1)


def _pick_tiles(n, d, itemsize, cfg):
    # Reduction-axis tile: full D when it fits (always a legal block), else a
    # 128-aligned chunk (max_tile_d is always a multiple of 128).
    tile_d = d if d <= cfg["max_tile_d"] else cfg["max_tile_d"]
    # Batch-axis tile: largest multiple of 8 such that the pipelined input
    # tiles (zx + zy, _INPUT_PIPELINE_BUFFERS copies each) fit the budget.
    bytes_per_row = 2 * _INPUT_PIPELINE_BUFFERS * tile_d * itemsize
    tile_n = (cfg["input_budget"] // bytes_per_row) // 8 * 8
    tile_n = max(8, min(tile_n, _MAX_TILE_N))
    if cfg["n_splits"] > 1:
        # Guarantee the "parallel" N axis yields >= n_splits blocks so it
        # actually shards across TensorCores (v7x megacore).
        per_core = -(-n // cfg["n_splits"])      # cdiv
        per_core = max(8, -(-per_core // 8) * 8)  # round up to sublane multiple
        tile_n = min(tile_n, per_core)
    if n <= tile_n:
        tile_n = n  # single full-N block ("equal full dim" is always legal)
    return tile_n, tile_d


def _input_spec(tile_n, tile_d, buffers):
    index_map = lambda i, k: (i, k)
    if buffers != 2 and hasattr(pl, "Buffered"):
        try:
            return pl.BlockSpec((tile_n, tile_d), index_map,
                                pipeline_mode=pl.Buffered(buffers))
        except TypeError:
            pass  # older BlockSpec without pipeline_mode: default 2 buffers
    return pl.BlockSpec((tile_n, tile_d), index_map)


def _make_kernel(d_total: int, tile_d: int, needs_mask: bool):
    """Grid = (N tiles, D tiles).  acc_ref is an f32 (tile_n, 128) accumulator."""
    n_full = tile_d // 128          # number of full 128-lane column chunks
    rem = tile_d - n_full * 128     # ragged lane remainder (only when tile_d == D)

    def kernel(zx_ref, zy_ref, o_ref, acc_ref):
        k = pl.program_id(1)

        @pl.when(k == 0)
        def _init():
            acc_ref[...] = jnp.zeros_like(acc_ref)

        # Elementwise product on the VPU, accumulated in f32 (exact for f32
        # inputs, higher precision than the input dtype for bf16 activations).
        prod = zx_ref[...].astype(jnp.float32) * zy_ref[...].astype(jnp.float32)

        if needs_mask:
            # Ragged final reduction block: lanes past D read out-of-bounds
            # garbage from the window, so zero them before accumulating.
            # (Applied every step; a no-op select on non-final steps.)
            col = k * tile_d + jax.lax.broadcasted_iota(jnp.int32, prod.shape, 1)
            prod = jnp.where(col < d_total, prod, 0.0)

        # Lane-dense partial sums: full-vreg VPU adds of 128-lane column
        # chunks.  No per-step XLU reduce, no masked 1-lane stores.
        if n_full > 0:
            partial = prod[:, 0:128]
            for c in range(1, n_full):
                partial = partial + prod[:, c * 128:(c + 1) * 128]
            acc_ref[...] += partial
        if rem > 0:
            # Only hit when tile_d == D is not a multiple of 128 (single
            # reduction step for auto-picked tiles), so the masked sub-lane
            # store is off the hot path.
            acc_ref[:, 0:rem] = acc_ref[:, 0:rem] + prod[:, n_full * 128:tile_d]

        @pl.when(k == pl.num_programs(1) - 1)
        def _finalize():
            # One cross-lane (XLU) reduce + sigmoid (EUP) per output tile.
            # NOTE: rows of a partial final N block hold garbage, but every
            # row is independent and Pallas clips the output writeback, so the
            # valid rows stay correct.  Don't add cross-row ops here.
            row_sum = jnp.sum(acc_ref[...], axis=1, keepdims=True)
            o_ref[...] = jax.nn.sigmoid(row_sum).astype(o_ref.dtype)

    return kernel


def sample_decoder(zx: jax.Array, zy: jax.Array, *, tile_n=None, tile_d=None) -> jax.Array:
    """Pallas equivalent of SampleDecoder.forward: sigmoid((zx * zy).sum(1))."""
    assert zx.shape == zy.shape and zx.ndim == 2
    n, d = zx.shape
    itemsize = jnp.dtype(zx.dtype).itemsize
    cfg = _chip_config()

    auto_n, auto_d = _pick_tiles(n, d, itemsize, cfg)
    tile_n = auto_n if tile_n is None else tile_n
    tile_d = auto_d if tile_d is None else tile_d

    grid = (pl.cdiv(n, tile_n), pl.cdiv(d, tile_d))
    needs_mask = (d % tile_d) != 0  # ragged final reduction block -> in-kernel mask
    # Only ask for extra pipeline depth when the grid is long enough to use it.
    buffers = _INPUT_PIPELINE_BUFFERS if grid[0] * grid[1] >= _INPUT_PIPELINE_BUFFERS else 2

    kernel = _make_kernel(d_total=d, tile_d=tile_d, needs_mask=needs_mask)

    cost = pl.CostEstimate(
        flops=2 * n * d,
        transcendentals=n,
        bytes_accessed=2 * n * d * itemsize + n * itemsize,
    )

    out = pl.pallas_call(
        kernel,
        out_shape=jax.ShapeDtypeStruct((n, 1), zx.dtype),
        grid=grid,
        in_specs=[
            _input_spec(tile_n, tile_d, buffers),
            _input_spec(tile_n, tile_d, buffers),
        ],
        # Output stays (tile_n, 1): HBM writeback is D x smaller than the
        # streamed inputs, so the narrow store is fully hidden behind input
        # DMA.  A lane-dense (1, tile_n) store is the lever if a profile ever
        # shows exposed writeback.
        out_specs=pl.BlockSpec((tile_n, 1), lambda i, k: (i, 0)),
        scratch_shapes=[pltpu.VMEM((tile_n, 128), jnp.float32)],
        compiler_params=pltpu.CompilerParams(
            # Batch tiles shard across TensorCores (2x on v7x megacore); the
            # reduction axis stays innermost and "arbitrary".
            dimension_semantics=("parallel", "arbitrary"),
            vmem_limit_bytes=cfg["vmem_limit"],
        ),
        cost_estimate=cost,
    )(zx, zy)
    return out[:, 0]  # (N,) to match PyTorch's .sum(1) output shape


if __name__ == "__main__":
    key = jax.random.PRNGKey(0)
    kx, ky = jax.random.split(key)

    def ref_fn(a, b):
        return jax.nn.sigmoid(jnp.sum(a * b, axis=1))

    # 1) Small shape consistent with the module: batch N=8, hidden D=32.
    N, D = 8, 32
    zx = jax.random.normal(kx, (N, D), dtype=jnp.float32)
    zy = jax.random.normal(ky, (N, D), dtype=jnp.float32)
    sim = sample_decoder(zx, zy)
    jax.block_until_ready(sim)
    assert sim.shape == (N,)
    assert jnp.allclose(sim, ref_fn(zx, zy), atol=1e-5, rtol=1e-5)

    # 2) Multi-tile N + multi-step D reduction through the lane-dense f32
    #    accumulator (forced small tiles).
    N2, D2 = 64, 256
    zx2 = jax.random.normal(kx, (N2, D2), dtype=jnp.float32)
    zy2 = jax.random.normal(ky, (N2, D2), dtype=jnp.float32)
    sim2 = sample_decoder(zx2, zy2, tile_n=16, tile_d=128)
    jax.block_until_ready(sim2)
    assert sim2.shape == (N2,)
    assert jnp.allclose(sim2, ref_fn(zx2, zy2), atol=1e-5, rtol=1e-5)

    # 3) Ragged final D block (in-kernel lane mask) and ragged final N block
    #    (clipped writeback) — no host-side padding anywhere.
    N3, D3 = 24, 200
    zx3 = jax.random.normal(kx, (N3, D3), dtype=jnp.float32)
    zy3 = jax.random.normal(ky, (N3, D3), dtype=jnp.float32)
    sim3 = sample_decoder(zx3, zy3, tile_n=16, tile_d=128)
    jax.block_until_ready(sim3)
    assert sim3.shape == (N3,)
    assert jnp.allclose(sim3, ref_fn(zx3, zy3), atol=1e-5, rtol=1e-5)

    print("KERNEL_OK")
</pallas_src>

<mosaic_0001>
module attributes {stable_mosaic.version = 11 : i64} {
  func.func @kernel(%arg0: i32, %arg1: i32, %arg2: memref<8x32xf32, #tpu.memory_space<vmem>>, %arg3: memref<8x32xf32, #tpu.memory_space<vmem>>, %arg4: memref<8x1xf32, #tpu.memory_space<vmem>>, %arg5: memref<8x128xf32, #tpu.memory_space<vmem>>) attributes {dimension_semantics = [#tpu.dimension_semantics<parallel>, #tpu.dimension_semantics<arbitrary>], iteration_bounds = array<i64: 1, 1>, scalar_prefetch = 0 : i64, scratch_operands = 1 : i64, tpu.core_type = #tpu.core_type<tc>, window_params = [{transform_indices = @transform_0, window_bounds = array<i64: 8, 32>}, {transform_indices = @transform_1, window_bounds = array<i64: 8, 32>}, {transform_indices = @transform_2, window_bounds = array<i64: 8, 1>}]} {
    %c0_i32 = arith.constant 0 : i32
    %0 = arith.cmpi eq, %arg1, %c0_i32 : i32
    %1 = arith.extui %0 : i1 to i32
    %c0_i32_0 = arith.constant 0 : i32
    %2 = arith.cmpi ne, %1, %c0_i32_0 : i32
    scf.if %2 {
      %cst = arith.constant 0.000000e+00 : f32
      %12 = vector.broadcast %cst : f32 to vector<8x128xf32>
      %c0_10 = arith.constant 0 : index
      %c0_11 = arith.constant 0 : index
      %13 = vector.load %arg5[%c0_10, %c0_11] : memref<8x128xf32, #tpu.memory_space<vmem>>, vector<8x128xf32>
      tpu.vector_store %arg5[%c0_10, %c0_11], %12 {strides = array<i32>} : memref<8x128xf32, #tpu.memory_space<vmem>>, vector<8x128xf32>,
    } else {
    }
    %c0 = arith.constant 0 : index
    %c0_1 = arith.constant 0 : index
    %3 = vector.load %arg2[%c0, %c0_1] : memref<8x32xf32, #tpu.memory_space<vmem>>, vector<8x32xf32>
    %c0_2 = arith.constant 0 : index
    %c0_3 = arith.constant 0 : index
    %4 = vector.load %arg3[%c0_2, %c0_3] : memref<8x32xf32, #tpu.memory_space<vmem>>, vector<8x32xf32>
    %5 = arith.mulf %3, %4 : vector<8x32xf32>
    %c0_4 = arith.constant 0 : index
    %c0_5 = arith.constant 0 : index
    %6 = vector.load %arg5[%c0_4, %c0_5] : memref<8x128xf32, #tpu.memory_space<vmem>>, vector<8x32xf32>
    %7 = arith.addf %6, %5 : vector<8x32xf32>
    %c0_6 = arith.constant 0 : index
    %c0_7 = arith.constant 0 : index
    %8 = vector.load %arg5[%c0_6, %c0_7] : memref<8x128xf32, #tpu.memory_space<vmem>>, vector<8x32xf32>
    tpu.vector_store %arg5[%c0_6, %c0_7], %7 {strides = array<i32>} : memref<8x128xf32, #tpu.memory_space<vmem>>, vector<8x32xf32>,
    %c0_i32_8 = arith.constant 0 : i32
    %9 = arith.cmpi eq, %arg1, %c0_i32_8 : i32
    %10 = arith.extui %9 : i1 to i32
    %c0_i32_9 = arith.constant 0 : i32
    %11 = arith.cmpi ne, %10, %c0_i32_9 : i32
    scf.if %11 {
      %c0_10 = arith.constant 0 : index
      %c0_11 = arith.constant 0 : index
      %12 = vector.load %arg5[%c0_10, %c0_11] : memref<8x128xf32, #tpu.memory_space<vmem>>, vector<8x128xf32>
      %cst = arith.constant dense<0.000000e+00> : vector<8xf32>
      %13 = vector.multi_reduction <add>, %12, %cst [1] : vector<8x128xf32> to vector<8xf32>
      %14 = vector.shape_cast %13 : vector<8xf32> to vector<8x1xf32>
      %15 = arith.negf %14 : vector<8x1xf32>
      %16 = math.exp %15 : vector<8x1xf32>
      %cst_12 = arith.constant 1.000000e+00 : f32
      %17 = vector.broadcast %cst_12 : f32 to vector<8x1xf32>
      %18 = arith.addf %17, %16 : vector<8x1xf32>
      %19 = arith.divf %17, %18 : vector<8x1xf32>
      %c0_13 = arith.constant 0 : index
      %c0_14 = arith.constant 0 : index
      %20 = vector.load %arg4[%c0_13, %c0_14] : memref<8x1xf32, #tpu.memory_space<vmem>>, vector<8x1xf32>
      tpu.vector_store %arg4[%c0_13, %c0_14], %19 {strides = array<i32>} : memref<8x1xf32, #tpu.memory_space<vmem>>, vector<8x1xf32>,
    } else {
    }
    return
  }
  func.func @transform_0(%arg0: i32, %arg1: i32) -> (i32, i32) {
    %c0_i32 = arith.constant 0 : i32
    return %arg0, %arg1 : i32, i32
  }
  func.func @transform_1(%arg0: i32, %arg1: i32) -> (i32, i32) {
    %c0_i32 = arith.constant 0 : i32
    return %arg0, %arg1 : i32, i32
  }
  func.func @transform_2(%arg0: i32, %arg1: i32) -> (i32, i32) {
    %c0_i32 = arith.constant 0 : i32
    %c0_i32_0 = arith.constant 0 : i32
    return %arg0, %c0_i32 : i32, i32
  }
}

</mosaic_0001>

<llo_original>
// kernel: tpu_custom_call.1
$region0: #{tpu_custom_call.1}
  #allocation0 [shape = 'u32[]', space=smem, size = 0x4, offset = 0x4, fixed_abs, tag = 'smem constant byte address 0x4 - core index']
  #allocation1 [shape = 'u32[144,128]{1,0:T(1,128)}', space=vmem, size = 0x12000, scoped, tag = 'internal scratch']
  #allocation2 [shape = 'f32[8,128]{1,0:T(8,128)}', space=vmem, size = 0x1000, scoped, tag = 'scratch operand']
  %s0 = inlined_call_operand.hbm [shape: f32[8,32], index: 0, kind: input, shape index: {}]
  %s1 = inlined_call_operand.hbm [shape: f32[8,32], index: 1, kind: input, shape index: {}]
  %s2 = inlined_call_operand.vmem [shape: f32[8,1], index: 2, kind: output, shape index: {}]
  %s3 = sld [smem:[#allocation0]]
  $region34: #{tpu_custom_call.1} parent=0
    _
  %s5 = ssub.s32 1, %s3
  %s6 = scalar_select 0, %s5, %s3
  $region1: #{tpu_custom_call.1} parent=0
    #allocation3 [shape = 'u8[4096]{0}', space=vmem, size = 0x1000, scoped, tag = 'input window, operand 0, single buffered']
    #allocation4 [shape = 's32[1]{0}', space=sflag, size = 0x4, scoped, tag = 'scoped memory for tpu_custom_call.1']
    #allocation5 [shape = 'u8[4096]{0}', space=vmem, size = 0x1000, scoped, tag = 'input window, operand 1, single buffered']
    #allocation6 [shape = 's32[1]{0}', space=sflag, size = 0x4, scoped, tag = 'scoped memory for tpu_custom_call.1']
    %7 = vsyncpa [#allocation4], 0
    %8 = vsyncpa [#allocation6], 0
    // Predicated region
    $region2: #{tpu_custom_call.1} parent=1 // pred_check
      _
    $region3: #{tpu_custom_call.1} parent=1 // pred_check_branch
      %10 = sbr.rel (0) target = $region5
    $region4: #{tpu_custom_call.1} parent=1 // pred_region
      %s12 = ssub.s32 128, 128
      %13 = vsyncadd [#allocation4], %s12
      %s15 = sshll.u32 [#allocation3], 4
      %s16 = int_to_ptr.vmem [resolvable:$true] %s15
      %18 = dma.hbm_to_vmem [thread:$0]  %s0, 128, %s16, [#allocation4]
    $region5: #{tpu_custom_call.1} parent=1 // pred_fallthru
      _
    // Predicated region
    $region6: #{tpu_custom_call.1} parent=1 // pred_check
      _
    $region7: #{tpu_custom_call.1} parent=1 // pred_check_branch
      %20 = sbr.rel (0) target = $region9
    $region8: #{tpu_custom_call.1} parent=1 // pred_region
      %s22 = ssub.s32 128, 128
      %23 = vsyncadd [#allocation6], %s22
      %s25 = sshll.u32 [#allocation5], 4
      %s26 = int_to_ptr.vmem [resolvable:$true] %s25
      %28 = dma.hbm_to_vmem [thread:$0]  %s1, 128, %s26, [#allocation6]
    $region9: #{tpu_custom_call.1} parent=1 // pred_fallthru
      _
    // Predicated region
    $region10: #{tpu_custom_call.1} parent=1 // pred_check
      _
    $region11: #{tpu_custom_call.1} parent=1 // pred_check_branch
      %30 = sbr.rel (0) target = $region13
    $region12: #{tpu_custom_call.1} parent=1 // pred_region
      %31 = dma.done [#allocation4], 128
    $region13: #{tpu_custom_call.1} parent=1 // pred_fallthru
      _
    // Predicated region
    $region14: #{tpu_custom_call.1} parent=1 // pred_check
      _
    $region15: #{tpu_custom_call.1} parent=1 // pred_check_branch
      %33 = sbr.rel (0) target = $region17
    $region16: #{tpu_custom_call.1} parent=1 // pred_region
      %34 = dma.done [#allocation6], 128
    $region17: #{tpu_custom_call.1} parent=1 // pred_fallthru
      _
    %p35 = scmp.eq.s32.totalorder 0, 0
    // Predicated region
    $region18: #{tpu_custom_call.1} parent=1 // pred_check
      %p36 = pneg %p35
    $region19: #{tpu_custom_call.1} parent=1 // pred_check_branch
      %38 = sbr.rel (%p36) target = $region21
    $region20: #{tpu_custom_call.1} parent=1 // pred_region
      %39 = vst [vmem:[#allocation2] sm:$0xff] 0.0
    $region21: #{tpu_custom_call.1} parent=1 // pred_fallthru
      _
    %v40 = vld [vmem:[#allocation3] sm:$0xff]
    %v41 = vld [vmem:[#allocation5] sm:$0xff]
    %v42 = vmul.f32 %v40, %v41
    %v43 = vld [vmem:[#allocation2] sm:$0xff]
    %v44 = vadd.f32 %v43, %v42
    %vm45 = vcmask 261120
    %46 = vst.msk [vmem:[#allocation2] sm:$0xff] %vm45, %v44
    // Predicated region
    $region22: #{tpu_custom_call.1} parent=1 // pred_check
      %p47 = pneg %p35
    $region23: #{tpu_custom_call.1} parent=1 // pred_check_branch
      %49 = sbr.rel (%p47) target = $region25
    $region24: #{tpu_custom_call.1} parent=1 // pred_region
      %v50 = vld [vmem:[#allocation2] sm:$0xff]
      %51 = vadd.xlane.f32.xlu0 %v50
      %v52 = vpop.xlane.xlu0 %51
      %v53 = vxor.u32 %v52, 2147483648
      %v54 = vmul.f32 %v53, 1.442695
      %v55 = vpow.pop %v54
      %v56 = vadd.f32 %v55, 1.0
      %v57 = vrcp.pop %v56
      %v58 = vmul.f32 1.0, %v57
      %vm59 = vcmask 7168
      %60 = vst.msk [vmem:[%s2] sm:$0xff] %vm59, %v58
    $region25: #{tpu_custom_call.1} parent=1 // pred_fallthru
      _
    // Predicated region
    $region26: #{tpu_custom_call.1} parent=1 // pred_check
      _
    $region27: #{tpu_custom_call.1} parent=1 // pred_check_branch
      %62 = sbr.rel (0) target = $region29
    $region28: #{tpu_custom_call.1} parent=1 // pred_region
      _
    $region29: #{tpu_custom_call.1} parent=1 // pred_fallthru
      _
    // Predicated region
    $region30: #{tpu_custom_call.1} parent=1 // pred_check
      _
    $region31: #{tpu_custom_call.1} parent=1 // pred_check_branch
      %64 = sbr.rel (0) target = $region33
    $region32: #{tpu_custom_call.1} parent=1 // pred_region
      _
    $region33: #{tpu_custom_call.1} parent=1 // pred_fallthru
      _
    %65 = vsyncpa [#allocation4], 1
    %66 = vsyncpa [#allocation6], 1

</llo_original>
